<compile_context>
chip_gen: v7x
topology: tpu7x:2x2x1
jax: 0.10.0
libtpu: 0.0.40
codegen_flags: <defaults>
</compile_context>

<pallas_src>
import jax
import jax.numpy as jnp
from jax.experimental import pallas as pl
from jax.experimental.pallas import tpu as pltpu


# ----------------------------------------------------------------------------
# Generation-aware tiling limits.
# ----------------------------------------------------------------------------
def _select_limits():
    """Returns (tile_cap_pixels, vmem_limit_bytes) based on the TPU generation."""
    try:
        vmem_cap = int(pltpu.get_tpu_info().vmem_capacity_bytes)
    except Exception:
        vmem_cap = 64 * 1024 * 1024  # conservative default (v7x per-TC VMEM)
    if vmem_cap >= 100 * 1024 * 1024:          # v5e / v6e: 128 MiB physical VMEM
        return 32768, 64 * 1024 * 1024
    return 16384, 48 * 1024 * 1024             # v7x: 64 MiB per TensorCore


def _round_up(x, m):
    return ((x + m - 1) // m) * m


def _pick_tile(hw, cap):
    """Pick a pixel tile (multiple of 128) and padded pixel count.

    Returns (tile, hw_pad) with tile | hw_pad and hw_pad >= hw.
    """
    hw128 = _round_up(hw, 128)
    if hw128 <= cap:
        return hw128, hw128                    # single (possibly padded) tile
    # Largest 128-multiple divisor of the 128-rounded pixel count that fits.
    best = 128
    for t in range(128, cap + 1, 128):
        if hw128 % t == 0:
            best = t
    if best * 4 >= cap:                        # big enough: minimal (<128) padding
        return best, hw128
    # Awkward factorization: take the full cap and pad to a tile multiple.
    return cap, _round_up(hw, cap)


# ----------------------------------------------------------------------------
# Kernel A: conv1 (+bias) -> LeakyReLU -> conv2, accumulate BN batch statistics
# directly into a per-batch resident output block (pixel axis is "arbitrary").
# ----------------------------------------------------------------------------
def _make_stats_kernel(tile, hw, masked):
    def kernel(x_ref, w1_ref, b1_ref, w2_ref, sum_ref, sq_ref):
        j = pl.program_id(1)

        @pl.when(j == 0)
        def _():
            sum_ref[...] = jnp.zeros_like(sum_ref)
            sq_ref[...] = jnp.zeros_like(sq_ref)

        x = x_ref[0].astype(jnp.bfloat16)                              # (C, Tp)
        h1 = jnp.dot(w1_ref[...], x,
                     preferred_element_type=jnp.float32) + b1_ref[...]  # (ndf, Tp) f32
        h1 = jnp.maximum(h1, 0.2 * h1)                                  # LeakyReLU(0.2)
        h2 = jnp.dot(w2_ref[...], h1.astype(jnp.bfloat16),
                     preferred_element_type=jnp.float32)                # (ndf2, Tp) f32
        if masked:
            lane = jax.lax.broadcasted_iota(jnp.int32, (1, tile), 1)
            valid = (j * tile + lane) < hw
            h2 = jnp.where(valid, h2, 0.0)
        sum_ref[0] += jnp.sum(h2, axis=1, keepdims=True)                # (ndf2, 1)
        sq_ref[0] += jnp.sum(h2 * h2, axis=1, keepdims=True)            # (ndf2, 1)

    return kernel


# ----------------------------------------------------------------------------
# Kernel B: recompute conv1->lrelu->conv2, then BN affine -> LeakyReLU -> conv3.
# Output is a lane-dense (1, Tp) row per tile.
# ----------------------------------------------------------------------------
def _fwd_kernel(x_ref, w1_ref, b1_ref, w2_ref, scale_ref, shift_ref, w3_ref,
                out_ref):
    x = x_ref[0].astype(jnp.bfloat16)                                  # (C, Tp)
    h1 = jnp.dot(w1_ref[...], x,
                 preferred_element_type=jnp.float32) + b1_ref[...]
    h1 = jnp.maximum(h1, 0.2 * h1)
    h2 = jnp.dot(w2_ref[...], h1.astype(jnp.bfloat16),
                 preferred_element_type=jnp.float32)                   # (ndf2, Tp)
    y = h2 * scale_ref[...] + shift_ref[...]                           # BN (f32)
    y = jnp.maximum(y, 0.2 * y)                                        # LeakyReLU(0.2)
    # conv3 (ndf2 -> 1): VPU multiply + sublane (XLU) reduction, no MXU here.
    out_ref[0] = jnp.sum(y * w3_ref[...], axis=0, keepdims=True)       # (1, Tp)


def pixel_discriminator_forward(x_nchw, params):
    """x_nchw: (N, C, H, W) float32.  Returns (N, 1, H, W) float32."""
    N, C, H, W = x_nchw.shape
    w1, b1, w2, gamma, beta, w3 = params
    ndf = w1.shape[0]
    ndf2 = w2.shape[0]
    HW = H * W
    P = N * HW

    tile_cap, vmem_limit = _select_limits()
    tile, hw_pad = _pick_tile(HW, tile_cap)
    tn = hw_pad // tile
    masked = hw_pad != HW
    grid = (N, tn)

    # ---- layout glue: pure reshapes (+ optional lane padding), no transposes --
    x = x_nchw.reshape(N, C, HW)
    if masked:
        x = jnp.pad(x, ((0, 0), (0, 0), (0, hw_pad - HW)))
    w1_bf = w1.astype(jnp.bfloat16)
    w2_bf = w2.astype(jnp.bfloat16)
    b1_col = b1.reshape(ndf, 1).astype(jnp.float32)
    w3_col = w3.reshape(ndf2, 1).astype(jnp.float32)

    stats_cparams = pltpu.CompilerParams(
        dimension_semantics=("parallel", "arbitrary"),
        vmem_limit_bytes=vmem_limit)
    fwd_cparams = pltpu.CompilerParams(
        dimension_semantics=("parallel", "parallel"),
        vmem_limit_bytes=vmem_limit)

    # ---- pass 1: per-batch BN partial statistics (h2 stays in VMEM) ---------
    part_sum, part_sq = pl.pallas_call(
        _make_stats_kernel(tile, HW, masked),
        out_shape=(jax.ShapeDtypeStruct((N, ndf2, 1), jnp.float32),
                   jax.ShapeDtypeStruct((N, ndf2, 1), jnp.float32)),
        grid_spec=pltpu.PrefetchScalarGridSpec(
            num_scalar_prefetch=0,
            grid=grid,
            in_specs=[
                pl.BlockSpec((1, C, tile), lambda n, j: (n, 0, j)),   # x tile
                pl.BlockSpec((ndf, C), lambda n, j: (0, 0)),          # w1 (resident)
                pl.BlockSpec((ndf, 1), lambda n, j: (0, 0)),          # b1
                pl.BlockSpec((ndf2, ndf), lambda n, j: (0, 0)),       # w2 (resident)
            ],
            out_specs=(
                pl.BlockSpec((1, ndf2, 1), lambda n, j: (n, 0, 0)),   # per-batch sum
                pl.BlockSpec((1, ndf2, 1), lambda n, j: (n, 0, 0)),   # per-batch sumsq
            )),
        compiler_params=stats_cparams,
    )(x, w1_bf, b1_col, w2_bf)

    # ---- tiny JAX glue: finalize training-mode BN scale/shift ---------------
    eps = 1e-5
    s = jnp.sum(part_sum[:, :, 0], axis=0)                  # (ndf2,)
    sq = jnp.sum(part_sq[:, :, 0], axis=0)                  # (ndf2,)
    mean = s / P
    var = jnp.maximum(sq / P - mean * mean, 0.0)            # biased batch variance
    scale = gamma / jnp.sqrt(var + eps)
    shift = beta - mean * scale
    scale_col = scale.reshape(ndf2, 1).astype(jnp.float32)
    shift_col = shift.reshape(ndf2, 1).astype(jnp.float32)

    # ---- pass 2: recompute + BN affine + LeakyReLU + conv3 ------------------
    out = pl.pallas_call(
        _fwd_kernel,
        out_shape=jax.ShapeDtypeStruct((N, 1, hw_pad), jnp.float32),
        grid_spec=pltpu.PrefetchScalarGridSpec(
            num_scalar_prefetch=0,
            grid=grid,
            in_specs=[
                pl.BlockSpec((1, C, tile), lambda n, j: (n, 0, j)),   # x tile
                pl.BlockSpec((ndf, C), lambda n, j: (0, 0)),          # w1
                pl.BlockSpec((ndf, 1), lambda n, j: (0, 0)),          # b1
                pl.BlockSpec((ndf2, ndf), lambda n, j: (0, 0)),       # w2
                pl.BlockSpec((ndf2, 1), lambda n, j: (0, 0)),         # BN scale
                pl.BlockSpec((ndf2, 1), lambda n, j: (0, 0)),         # BN shift
                pl.BlockSpec((ndf2, 1), lambda n, j: (0, 0)),         # w3 column
            ],
            out_specs=pl.BlockSpec((1, 1, tile), lambda n, j: (n, 0, j))),
        compiler_params=fwd_cparams,
    )(x, w1_bf, b1_col, w2_bf, scale_col, shift_col, w3_col)

    if masked:
        out = out[:, :, :HW]
    # ---- back to NCHW: pure reshape ----------------------------------------
    return out.reshape(N, 1, H, W)


def init_params(key, input_nc, ndf):
    """Deterministic synthetic parameters matching the module's shapes."""
    k1, k2, k3, k4 = jax.random.split(key, 4)
    w1 = jax.random.normal(k1, (ndf, input_nc), jnp.float32) * 0.05       # conv1 weight
    b1 = jax.random.normal(k2, (ndf,), jnp.float32) * 0.05                # conv1 bias
    w2 = jax.random.normal(k3, (2 * ndf, ndf), jnp.float32) * 0.05        # conv2 weight (no bias)
    gamma = jnp.ones((2 * ndf,), jnp.float32)                             # BN weight
    beta = jnp.zeros((2 * ndf,), jnp.float32)                             # BN bias
    w3 = jax.random.normal(k4, (1, 2 * ndf), jnp.float32) * 0.05          # conv3 weight (no bias)
    return (w1, b1, w2, gamma, beta, w3)


def _reference_forward(x_nchw, params):
    """Pure-JAX f32 reference (mirrors PyTorch semantics) for sanity checking."""
    w1, b1, w2, gamma, beta, w3 = params
    N, C, H, W = x_nchw.shape
    xp = jnp.transpose(x_nchw, (0, 2, 3, 1)).reshape(-1, C)
    h1 = xp @ w1.T + b1
    h1 = jnp.where(h1 > 0, h1, 0.2 * h1)
    h2 = h1 @ w2.T
    mean = jnp.mean(h2, axis=0)
    var = jnp.mean((h2 - mean) ** 2, axis=0)
    y = (h2 - mean) / jnp.sqrt(var + 1e-5) * gamma + beta
    y = jnp.where(y > 0, y, 0.2 * y)
    o = y @ w3.T
    return jnp.transpose(o.reshape(N, H, W, 1), (0, 3, 1, 2))


if __name__ == "__main__":
    key = jax.random.PRNGKey(0)
    k_in, k_par = jax.random.split(key)

    # Small shapes: batch=2, input_nc=4, spatial 16x16, ndf=32.
    N, input_nc, H, W = 2, 4, 16, 16
    ndf = 32

    x = jax.random.normal(k_in, (N, input_nc, H, W), jnp.float32)
    params = init_params(k_par, input_nc, ndf)

    out = jax.block_until_ready(pixel_discriminator_forward(x, params))
    assert out.shape == (N, 1, H, W), out.shape

    ref = jax.block_until_ready(_reference_forward(x, params))
    # Looser tolerance vs the pure-f32 reference: the kernel uses bf16 MXU
    # operands (f32 accumulation + f32 BN/affine/tail), per the perf review.
    assert jnp.allclose(out, ref, atol=5e-2, rtol=5e-2), "mismatch vs reference"

    print("KERNEL_OK")
</pallas_src>

<mosaic_0001>
module attributes {stable_mosaic.version = 11 : i64} {
  func.func @kernel(%arg0: i32, %arg1: i32, %arg2: memref<1x4x256xf32, #tpu.memory_space<vmem>>, %arg3: memref<32x4xbf16, #tpu.memory_space<vmem>>, %arg4: memref<32x1xf32, #tpu.memory_space<vmem>>, %arg5: memref<64x32xbf16, #tpu.memory_space<vmem>>, %arg6: memref<1x64x1xf32, #tpu.memory_space<vmem>>, %arg7: memref<1x64x1xf32, #tpu.memory_space<vmem>>) attributes {dimension_semantics = [#tpu.dimension_semantics<parallel>, #tpu.dimension_semantics<arbitrary>], iteration_bounds = array<i64: 2, 1>, scalar_prefetch = 0 : i64, scratch_operands = 0 : i64, tpu.core_type = #tpu.core_type<tc>, window_params = [{transform_indices = @transform_0, window_bounds = array<i64: 1, 4, 256>}, {pipeline_mode = #tpu.pipeline_mode<synchronous>, transform_indices = @transform_1, window_bounds = array<i64: 32, 4>}, {pipeline_mode = #tpu.pipeline_mode<synchronous>, transform_indices = @transform_2, window_bounds = array<i64: 32, 1>}, {pipeline_mode = #tpu.pipeline_mode<synchronous>, transform_indices = @transform_3, window_bounds = array<i64: 64, 32>}, {transform_indices = @transform_4, window_bounds = array<i64: 1, 64, 1>}, {transform_indices = @transform_5, window_bounds = array<i64: 1, 64, 1>}]} {
    %c0_i32 = arith.constant 0 : i32
    %0 = arith.cmpi eq, %arg1, %c0_i32 : i32
    %1 = arith.extui %0 : i1 to i32
    %c0_i32_0 = arith.constant 0 : i32
    %2 = arith.cmpi ne, %1, %c0_i32_0 : i32
    scf.if %2 {
      %cst_25 = arith.constant 0.000000e+00 : f32
      %34 = vector.broadcast %cst_25 : f32 to vector<1x64x1xf32>
      %c0_26 = arith.constant 0 : index
      %c0_27 = arith.constant 0 : index
      %c0_28 = arith.constant 0 : index
      %35 = vector.load %arg6[%c0_26, %c0_27, %c0_28] : memref<1x64x1xf32, #tpu.memory_space<vmem>>, vector<1x64x1xf32>
      tpu.vector_store %arg6[%c0_26, %c0_27, %c0_28], %34 {strides = array<i32>} : memref<1x64x1xf32, #tpu.memory_space<vmem>>, vector<1x64x1xf32>,
      %cst_29 = arith.constant 0.000000e+00 : f32
      %36 = vector.broadcast %cst_29 : f32 to vector<1x64x1xf32>
      %c0_30 = arith.constant 0 : index
      %c0_31 = arith.constant 0 : index
      %c0_32 = arith.constant 0 : index
      %37 = vector.load %arg7[%c0_30, %c0_31, %c0_32] : memref<1x64x1xf32, #tpu.memory_space<vmem>>, vector<1x64x1xf32>
      tpu.vector_store %arg7[%c0_30, %c0_31, %c0_32], %36 {strides = array<i32>} : memref<1x64x1xf32, #tpu.memory_space<vmem>>, vector<1x64x1xf32>,
    } else {
    }
    %c0 = arith.constant 0 : index
    %c0_1 = arith.constant 0 : index
    %c0_2 = arith.constant 0 : index
    %3 = vector.load %arg2[%c0, %c0_1, %c0_2] : memref<1x4x256xf32, #tpu.memory_space<vmem>>, vector<1x4x256xf32>
    %4 = vector.shape_cast %3 : vector<1x4x256xf32> to vector<4x256xf32>
    %5 = arith.truncf %4 : vector<4x256xf32> to vector<4x256xbf16>
    %c0_3 = arith.constant 0 : index
    %c0_4 = arith.constant 0 : index
    %6 = vector.load %arg3[%c0_3, %c0_4] : memref<32x4xbf16, #tpu.memory_space<vmem>>, vector<32x4xbf16>
    %cst = arith.constant dense<0.000000e+00> : vector<32x256xf32>
    %7 = tpu.matmul %6, %5, %cst {dimension_numbers = #tpu.dot_dimension_numbers<[1], [0], [0], [1], [0, 0, 1, 1], [], []>} : vector<32x4xbf16>, vector<4x256xbf16>, vector<32x256xf32> -> vector<32x256xf32>
    %c0_5 = arith.constant 0 : index
    %c0_6 = arith.constant 0 : index
    %8 = vector.load %arg4[%c0_5, %c0_6] : memref<32x1xf32, #tpu.memory_space<vmem>>, vector<32x1xf32>
    %9 = vector.broadcast %8 : vector<32x1xf32> to vector<32x256xf32>
    %10 = arith.addf %7, %9 : vector<32x256xf32>
    %cst_7 = arith.constant 2.000000e-01 : f32
    %11 = vector.broadcast %cst_7 : f32 to vector<32x256xf32>
    %12 = arith.mulf %11, %10 : vector<32x256xf32>
    %13 = arith.maximumf %10, %12 : vector<32x256xf32>
    %c0_8 = arith.constant 0 : index
    %c0_9 = arith.constant 0 : index
    %14 = vector.load %arg5[%c0_8, %c0_9] : memref<64x32xbf16, #tpu.memory_space<vmem>>, vector<64x32xbf16>
    %15 = arith.truncf %13 : vector<32x256xf32> to vector<32x256xbf16>
    %cst_10 = arith.constant dense<0.000000e+00> : vector<64x256xf32>
    %16 = tpu.matmul %14, %15, %cst_10 {dimension_numbers = #tpu.dot_dimension_numbers<[1], [0], [0], [1], [0, 0, 1, 1], [], []>} : vector<64x32xbf16>, vector<32x256xbf16>, vector<64x256xf32> -> vector<64x256xf32>
    %c0_11 = arith.constant 0 : index
    %c0_12 = arith.constant 0 : index
    %c0_13 = arith.constant 0 : index
    %17 = vector.load %arg6[%c0_11, %c0_12, %c0_13] : memref<1x64x1xf32, #tpu.memory_space<vmem>>, vector<1x64x1xf32>
    %18 = vector.shape_cast %17 : vector<1x64x1xf32> to vector<64x1xf32>
    %cst_14 = arith.constant dense<0.000000e+00> : vector<64xf32>
    %19 = vector.multi_reduction <add>, %16, %cst_14 [1] : vector<64x256xf32> to vector<64xf32>
    %20 = vector.shape_cast %19 : vector<64xf32> to vector<64x1xf32>
    %21 = arith.addf %18, %20 : vector<64x1xf32>
    %c0_15 = arith.constant 0 : index
    %c0_16 = arith.constant 0 : index
    %c0_17 = arith.constant 0 : index
    %22 = vector.load %arg6[%c0_15, %c0_16, %c0_17] : memref<1x64x1xf32, #tpu.memory_space<vmem>>, vector<1x64x1xf32>
    %23 = vector.shape_cast %22 : vector<1x64x1xf32> to vector<64x1xf32>
    %24 = vector.shape_cast %21 : vector<64x1xf32> to vector<1x64x1xf32>
    tpu.vector_store %arg6[%c0_15, %c0_16, %c0_17], %24 {strides = array<i32>} : memref<1x64x1xf32, #tpu.memory_space<vmem>>, vector<1x64x1xf32>,
    %c0_18 = arith.constant 0 : index
    %c0_19 = arith.constant 0 : index
    %c0_20 = arith.constant 0 : index
    %25 = vector.load %arg7[%c0_18, %c0_19, %c0_20] : memref<1x64x1xf32, #tpu.memory_space<vmem>>, vector<1x64x1xf32>
    %26 = vector.shape_cast %25 : vector<1x64x1xf32> to vector<64x1xf32>
    %27 = arith.mulf %16, %16 : vector<64x256xf32>
    %cst_21 = arith.constant dense<0.000000e+00> : vector<64xf32>
    %28 = vector.multi_reduction <add>, %27, %cst_21 [1] : vector<64x256xf32> to vector<64xf32>
    %29 = vector.shape_cast %28 : vector<64xf32> to vector<64x1xf32>
    %30 = arith.addf %26, %29 : vector<64x1xf32>
    %c0_22 = arith.constant 0 : index
    %c0_23 = arith.constant 0 : index
    %c0_24 = arith.constant 0 : index
    %31 = vector.load %arg7[%c0_22, %c0_23, %c0_24] : memref<1x64x1xf32, #tpu.memory_space<vmem>>, vector<1x64x1xf32>
    %32 = vector.shape_cast %31 : vector<1x64x1xf32> to vector<64x1xf32>
    %33 = vector.shape_cast %30 : vector<64x1xf32> to vector<1x64x1xf32>
    tpu.vector_store %arg7[%c0_22, %c0_23, %c0_24], %33 {strides = array<i32>} : memref<1x64x1xf32, #tpu.memory_space<vmem>>, vector<1x64x1xf32>,
    return
  }
  func.func @transform_0(%arg0: i32, %arg1: i32) -> (i32, i32, i32) {
    %c0_i32 = arith.constant 0 : i32
    %c0_i32_0 = arith.constant 0 : i32
    return %arg0, %c0_i32, %arg1 : i32, i32, i32
  }
  func.func @transform_1(%arg0: i32, %arg1: i32) -> (i32, i32) {
    %c0_i32 = arith.constant 0 : i32
    %c0_i32_0 = arith.constant 0 : i32
    %c0_i32_1 = arith.constant 0 : i32
    return %c0_i32, %c0_i32_0 : i32, i32
  }
  func.func @transform_2(%arg0: i32, %arg1: i32) -> (i32, i32) {
    %c0_i32 = arith.constant 0 : i32
    %c0_i32_0 = arith.constant 0 : i32
    %c0_i32_1 = arith.constant 0 : i32
    return %c0_i32, %c0_i32_0 : i32, i32
  }
  func.func @transform_3(%arg0: i32, %arg1: i32) -> (i32, i32) {
    %c0_i32 = arith.constant 0 : i32
    %c0_i32_0 = arith.constant 0 : i32
    %c0_i32_1 = arith.constant 0 : i32
    return %c0_i32, %c0_i32_0 : i32, i32
  }
  func.func @transform_4(%arg0: i32, %arg1: i32) -> (i32, i32, i32) {
    %c0_i32 = arith.constant 0 : i32
    %c0_i32_0 = arith.constant 0 : i32
    %c0_i32_1 = arith.constant 0 : i32
    return %arg0, %c0_i32, %c0_i32_0 : i32, i32, i32
  }
  func.func @transform_5(%arg0: i32, %arg1: i32) -> (i32, i32, i32) {
    %c0_i32 = arith.constant 0 : i32
    %c0_i32_0 = arith.constant 0 : i32
    %c0_i32_1 = arith.constant 0 : i32
    return %arg0, %c0_i32, %c0_i32_0 : i32, i32, i32
  }
}

</mosaic_0001>

<llo_original>
// kernel: tpu_custom_call.1
$region0: #{tpu_custom_call.1}
  #allocation0 [shape = 'u32[]', space=smem, size = 0x4, offset = 0x4, fixed_abs, tag = 'smem constant byte address 0x4 - core index']
  #allocation1 [shape = 'u32[144,128]{1,0:T(1,128)}', space=vmem, size = 0x12000, scoped, tag = 'internal scratch']
  %s0 = inlined_call_operand.vmem [shape: f32[2,4,256], index: 0, kind: input, shape index: {}]
  %s1 = inlined_call_operand.vmem [shape: bf16[32,4], index: 1, kind: input, shape index: {}]
  %s2 = inlined_call_operand.vmem [shape: f32[32,1], index: 2, kind: input, shape index: {}]
  %s3 = inlined_call_operand.vmem [shape: bf16[64,32], index: 3, kind: input, shape index: {}]
  %s4 = inlined_call_operand.vmem [shape: f32[2,64,1], index: 4, kind: output, shape index: {0}]
  %s5 = inlined_call_operand.vmem [shape: f32[2,64,1], index: 5, kind: output, shape index: {1}]
  %6 = xla_tuple %s4, %s5
  %s7 = sld [smem:[#allocation0]]
  $region61: #{tpu_custom_call.1} parent=0
    _
  %s9 = ssub.s32 1, %s7
  %s10 = scalar_select 0, %s9, %s7
  loop: start=0, step=1, limit=4
  $region2: #{tpu_custom_call.1} parent=0 // loop_pre_header
    _
  $region3: #{tpu_custom_call.1} parent=0 // loop_header
    %s12 = sphi 0, %s16
    %p13 = scmp.ge.s32.totalorder %s12, 4
    %s19 = sphi 0, %s31
    %s20 = sphi 0, %s27
    %s21 = sphi 0, %s19
    %s22 = sphi 0, %s20
    %s23 = sphi 0, %s21
    %s24 = sphi 0, %s22
    %s36 = sphi 0, %s38
    %s39 = sphi 0, %s36
    %s40 = sphi 0, %s39
    %s56 = sphi 0, %s40
    %s60 = sphi 0, %s60
    %s62 = sphi 0, %s60
    %s63 = sphi 0, %s62
    %s77 = sphi 0, %s63
    %s81 = sphi 0, %s81
    %s83 = sphi 0, %s81
    %s84 = sphi 0, %s83
    %s98 = sphi 0, %s84
    %s102 = sphi 0, %s102
    %s104 = sphi 0, %s102
    %s105 = sphi 0, %s104
    %s119 = sphi 0, %s105
    %s125 = sphi 0, %s127
    %s128 = sphi 0, %s125
    %s129 = sphi 0, %s128
    %s145 = sphi 0, %s129
    %s151 = sphi 0, %s153
    %s154 = sphi 0, %s151
    %s155 = sphi 0, %s154
    %s171 = sphi 0, %s155
  $region4: #{tpu_custom_call.1} parent=0 // loop_header_branch
    %15 = sbr.rel (%p13) target = $region8
  $region5: #{tpu_custom_call.1} parent=0 // loop_body
    %s17 = ssub.s32 %s12, 1
    %s18 = ssub.s32 %s12, 2
    %s25 = sadd.s32 1, %s20
    %p26 = scmp.ge.s32.totalorder %s25, 1
    %s27 = scalar_select %p26, 0, %s25
    %s28 = sadd.s32 1, %s19
    %s29 = scalar_select %p26, %s28, %s19
    %p30 = scmp.ge.s32.totalorder %s29, 2
    %s31 = scalar_select %p30, 0, %s29
    %s32 = ssub.s32 %s19, %s31
    %s33 = ssub.s32 %s20, %s27
    %s34 = sor.u32 %s32, %s33
    %p35 = scmp.eq.s32.totalorder %s34, 0
    %s37 = sadd.s32 %s36, 1
    %s38 = scalar_select %p35, %s36, %s37
    %p41 = pneg %p35
    %p42 = scmp.eq.s32.totalorder %s12, 1
    %p43 = por %p41, %p42
    %p44 = scmp.ne.s32.totalorder %s36, %s39
    %p45 = scmp.eq.s32.totalorder %s12, 0
    %p46 = por %p44, %p45
    %p47 = scmp.ne.s32.totalorder %s36, %s39
    %p48 = scmp.eq.s32.totalorder %s17, 1
    %p49 = por %p47, %p48
    %p50 = scmp.ne.s32.totalorder %s39, %s40
    %p51 = scmp.eq.s32.totalorder %s17, 0
    %p52 = por %p50, %p51
    %p53 = scmp.ne.s32.totalorder %s39, %s40
    %p54 = scmp.eq.s32.totalorder %s18, 1
    %p55 = por %p53, %p54
    %p57 = scmp.ne.s32.totalorder %s40, %s56
    %p58 = scmp.eq.s32.totalorder %s18, 0
    %p59 = por %p57, %p58
    %s61 = sadd.s32 %s60, 1
    %p64 = scmp.eq.s32.totalorder %s12, 1
    %p65 = scmp.ne.s32.totalorder %s60, %s62
    %p66 = scmp.eq.s32.totalorder %s12, 0
    %p67 = por %p65, %p66
    %p68 = scmp.ne.s32.totalorder %s60, %s62
    %p69 = scmp.eq.s32.totalorder %s17, 1
    %p70 = por %p68, %p69
    %p71 = scmp.ne.s32.totalorder %s62, %s63
    %p72 = scmp.eq.s32.totalorder %s17, 0
    %p73 = por %p71, %p72
    %p74 = scmp.ne.s32.totalorder %s62, %s63
    %p75 = scmp.eq.s32.totalorder %s18, 1
    %p76 = por %p74, %p75
    %p78 = scmp.ne.s32.totalorder %s63, %s77
    %p79 = scmp.eq.s32.totalorder %s18, 0
    %p80 = por %p78, %p79
    %s82 = sadd.s32 %s81, 1
    %p85 = scmp.eq.s32.totalorder %s12, 1
    %p86 = scmp.ne.s32.totalorder %s81, %s83
    %p87 = scmp.eq.s32.totalorder %s12, 0
    %p88 = por %p86, %p87
    %p89 = scmp.ne.s32.totalorder %s81, %s83
    %p90 = scmp.eq.s32.totalorder %s17, 1
    %p91 = por %p89, %p90
    %p92 = scmp.ne.s32.totalorder %s83, %s84
    %p93 = scmp.eq.s32.totalorder %s17, 0
    %p94 = por %p92, %p93
    %p95 = scmp.ne.s32.totalorder %s83, %s84
    %p96 = scmp.eq.s32.totalorder %s18, 1
    %p97 = por %p95, %p96
    %p99 = scmp.ne.s32.totalorder %s84, %s98
    %p100 = scmp.eq.s32.totalorder %s18, 0
    %p101 = por %p99, %p100
    %s103 = sadd.s32 %s102, 1
    %p106 = scmp.eq.s32.totalorder %s12, 1
    %p107 = scmp.ne.s32.totalorder %s102, %s104
    %p108 = scmp.eq.s32.totalorder %s12, 0
    %p109 = por %p107, %p108
    %p110 = scmp.ne.s32.totalorder %s102, %s104
    %p111 = scmp.eq.s32.totalorder %s17, 1
    %p112 = por %p110, %p111
    %p113 = scmp.ne.s32.totalorder %s104, %s105
    %p114 = scmp.eq.s32.totalorder %s17, 0
    %p115 = por %p113, %p114
    %p116 = scmp.ne.s32.totalorder %s104, %s105
    %p117 = scmp.eq.s32.totalorder %s18, 1
    %p118 = por %p116, %p117
    %p120 = scmp.ne.s32.totalorder %s105, %s119
    %p121 = scmp.eq.s32.totalorder %s18, 0
    %p122 = por %p120, %p121
    %s123 = ssub.s32 %s19, %s31
    %p124 = scmp.eq.s32.totalorder %s123, 0
    %s126 = sadd.s32 %s125, 1
    %s127 = scalar_select %p124, %s125, %s126
    %p130 = pneg %p124
    %p131 = scmp.eq.s32.totalorder %s12, 1
    %p132 = por %p130, %p131
    %p133 = scmp.ne.s32.totalorder %s125, %s128
    %p134 = scmp.eq.s32.totalorder %s12, 0
    %p135 = por %p133, %p134
    %p136 = scmp.ne.s32.totalorder %s125, %s128
    %p137 = scmp.eq.s32.totalorder %s17, 1
    %p138 = por %p136, %p137
    %p139 = scmp.ne.s32.totalorder %s128, %s129
    %p140 = scmp.eq.s32.totalorder %s17, 0
    %p141 = por %p139, %p140
    %p142 = scmp.ne.s32.totalorder %s128, %s129
    %p143 = scmp.eq.s32.totalorder %s18, 1
    %p144 = por %p142, %p143
    %p146 = scmp.ne.s32.totalorder %s129, %s145
    %p147 = scmp.eq.s32.totalorder %s18, 0
    %p148 = por %p146, %p147
    %s149 = ssub.s32 %s19, %s31
    %p150 = scmp.eq.s32.totalorder %s149, 0
    %s152 = sadd.s32 %s151, 1
    %s153 = scalar_select %p150, %s151, %s152
    %p156 = pneg %p150
    %p157 = scmp.eq.s32.totalorder %s12, 1
    %p158 = por %p156, %p157
    %p159 = scmp.ne.s32.totalorder %s151, %s154
    %p160 = scmp.eq.s32.totalorder %s12, 0
    %p161 = por %p159, %p160
    %p162 = scmp.ne.s32.totalorder %s151, %s154
    %p163 = scmp.eq.s32.totalorder %s17, 1
    %p164 = por %p162, %p163
    %p165 = scmp.ne.s32.totalorder %s154, %s155
    %p166 = scmp.eq.s32.totalorder %s17, 0
    %p167 = por %p165, %p166
    %p168 = scmp.ne.s32.totalorder %s154, %s155
    %p169 = scmp.eq.s32.totalorder %s18, 1
    %p170 = por %p168, %p169
    %p172 = scmp.ne.s32.totalorder %s155, %s171
    %p173 = scmp.eq.s32.totalorder %s18, 0
    %p174 = por %p172, %p173
    %p175 = scmp.le.s32.totalorder 1, %s12
    %p176 = scmp.lt.s32.totalorder %s12, 3
    %p177 = pnand %p175, %p176
    %p178 = pneg %p177
    // Predicated region
    $region9: #{tpu_custom_call.1} parent=5 // pred_check
      _
    $region10: #{tpu_custom_call.1} parent=5 // pred_check_branch
      %180 = sbr.rel (%p177) target = $region12
    $region11: #{tpu_custom_call.1} parent=5 // pred_region
      %s181 = ssub.s32 %s12, 1
      // Predicated region
      $region13: #{tpu_custom_call.1} parent=11 // pred_check
        %p182 = pneg %p73
      $region14: #{tpu_custom_call.1} parent=11 // pred_check_branch
        %184 = sbr.rel (%p182) target = $region16
      $region15: #{tpu_custom_call.1} parent=11 // pred_region
        _
      $region16: #{tpu_custom_call.1} parent=11 // pred_fallthru
        _
      // Predicated region
      $region17: #{tpu_custom_call.1} parent=11 // pred_check
        %p185 = pneg %p94
      $region18: #{tpu_custom_call.1} parent=11 // pred_check_branch
        %187 = sbr.rel (%p185) target = $region20
      $region19: #{tpu_custom_call.1} parent=11 // pred_region
        _
      $region20: #{tpu_custom_call.1} parent=11 // pred_fallthru
        _
      // Predicated region
      $region21: #{tpu_custom_call.1} parent=11 // pred_check
        %p188 = pneg %p115
      $region22: #{tpu_custom_call.1} parent=11 // pred_check_branch
        %190 = sbr.rel (%p188) target = $region24
      $region23: #{tpu_custom_call.1} parent=11 // pred_region
        _
      $region24: #{tpu_custom_call.1} parent=11 // pred_fallthru
        _
    $region12: #{tpu_custom_call.1} parent=5 // pred_fallthru
      _
    %p191 = scmp.lt.s32.totalorder %s12, 2
    // Predicated region
    $region25: #{tpu_custom_call.1} parent=5 // pred_check
      %p192 = pneg %p191
    $region26: #{tpu_custom_call.1} parent=5 // pred_check_branch
      %194 = sbr.rel (%p192) target = $region28
    $region27: #{tpu_custom_call.1} parent=5 // pred_region
      // Predicated region
      $region29: #{tpu_custom_call.1} parent=27 // pred_check
        %p195 = pneg %p46
      $region30: #{tpu_custom_call.1} parent=27 // pred_check_branch
        %197 = sbr.rel (%p195) target = $region32
      $region31: #{tpu_custom_call.1} parent=27 // pred_region
        %s198 = smul.u32 2, %s20
        %p199 = scmp.lt.s32.totalorder %s19, 1
        %s200 = scalar_select %p199, %s19, 1
        %p201 = scmp.lt.s32.totalorder %s198, 1
        %s202 = scalar_select %p201, %s198, 1
        %s203 = smul.addr %s200, 2
        %s204 = sadd.s32 %s202, %s203
        %s205 = smul.addr %s204, 4
        %s206 = scalar_lea.vmem %s0, %s205
        %s207 = smul.u32 2, %s20
      $region32: #{tpu_custom_call.1} parent=27 // pred_fallthru
        _
    $region28: #{tpu_custom_call.1} parent=5 // pred_fallthru
      _
    %p208 = scmp.le.s32.totalorder 1, %s12
    %p209 = scmp.lt.s32.totalorder %s12, 3
    %p210 = pnand %p208, %p209
    %p211 = pneg %p210
    // Predicated region
    $region33: #{tpu_custom_call.1} parent=5 // pred_check
      _
    $region34: #{tpu_custom_call.1} parent=5 // pred_check_branch
      %213 = sbr.rel (%p210) target = $region36
    $region35: #{tpu_custom_call.1} parent=5 // pred_region
      %s214 = ssub.s32 %s12, 1
      %s215 = smul.u32 2, %s22
      %p216 = scmp.lt.s32.totalorder %s21, 1
      %s217 = scalar_select %p216, %s21, 1
      %p218 = scmp.lt.s32.totalorder %s215, 1
      %s219 = scalar_select %p218, %s215, 1
      %s220 = smul.addr %s217, 2
      %s221 = sadd.s32 %s219, %s220
      %s222 = smul.addr %s221, 4
      %s223 = scalar_lea.vmem %s0, %s222
      %p224 = pneg %p52
      %p225 = pneg %p49
      %p226 = pneg %p73
      %p227 = pneg %p70
      %p228 = pneg %p94
      %p229 = pneg %p91
      %p230 = pneg %p115
      %p231 = pneg %p112
      %p232 = pneg %p141
      %p233 = pneg %p138
      %p234 = scmp.lt.s32.totalorder %s21, 1
      %s235 = scalar_select %p234, %s21, 1
      %s236 = smul.addr %s235, 8
      %s237 = smul.addr %s236, 8
      %s238 = scalar_lea.vmem %s4, %s237
      %p239 = pneg %p167
      %p240 = pneg %p164
      %p241 = scmp.lt.s32.totalorder %s21, 1
      %s242 = scalar_select %p241, %s21, 1
      %s243 = smul.addr %s242, 8
      %s244 = smul.addr %s243, 8
      %s245 = scalar_lea.vmem %s5, %s244
      %s246 = smul.u32 2, %s22
      %p247 = scmp.lt.s32.totalorder %s21, 1
      %s248 = scalar_select %p247, %s21, 1
      %p249 = scmp.lt.s32.totalorder %s246, 1
      %s250 = scalar_select %p249, %s246, 1
      %s251 = smul.addr %s248, 2
      %s252 = sadd.s32 %s250, %s251
      %s253 = smul.addr %s252, 4
      %s254 = scalar_lea.vmem %s0, %s253
      %s255 = smul.u32 2, %s22
      %p256 = scmp.lt.s32.totalorder %s21, 1
      %s257 = scalar_select %p256, %s21, 1
      %s258 = smul.addr %s257, 8
      %s259 = smul.addr %s258, 8
      %s260 = scalar_lea.vmem %s4, %s259
      %p261 = scmp.lt.s32.totalorder %s21, 1
      %s262 = scalar_select %p261, %s21, 1
      %s263 = smul.addr %s262, 8
      %s264 = smul.addr %s263, 8
      %s265 = scalar_lea.vmem %s5, %s264
      %p267 = scmp.eq.s32.totalorder %s22, 0
      // Predicated region
      $region37: #{tpu_custom_call.1} parent=35 // pred_check
        %p268 = pneg %p267
      $region38: #{tpu_custom_call.1} parent=35 // pred_check_branch
        %270 = sbr.rel (%p268) target = $region40
      $region39: #{tpu_custom_call.1} parent=35 // pred_region
        %vm271 = vcmask 7168
        %272 = vst.msk [vmem:[%s260] sm:$0xff] %vm271, 0.0
        %273 = vst.msk [vmem:[%s260 + $0x8] sm:$0xff] %vm271, 0.0
        %274 = vst.msk [vmem:[%s260 + $0x10] sm:$0xff] %vm271, 0.0
        %275 = vst.msk [vmem:[%s260 + $0x18] sm:$0xff] %vm271, 0.0
        %276 = vst.msk [vmem:[%s260 + $0x20] sm:$0xff] %vm271, 0.0
        %277 = vst.msk [vmem:[%s260 + $0x28] sm:$0xff] %vm271, 0.0
        %278 = vst.msk [vmem:[%s260 + $0x30] sm:$0xff] %vm271, 0.0
        %279 = vst.msk [vmem:[%s260 + $0x38] sm:$0xff] %vm271, 0.0
        %280 = vst.msk [vmem:[%s265] sm:$0xff] %vm271, 0.0
        %281 = vst.msk [vmem:[%s265 + $0x8] sm:$0xff] %vm271, 0.0
        %282 = vst.msk [vmem:[%s265 + $0x10] sm:$0xff] %vm271, 0.0
        %283 = vst.msk [vmem:[%s265 + $0x18] sm:$0xff] %vm271, 0.0
        %284 = vst.msk [vmem:[%s265 + $0x20] sm:$0xff] %vm271, 0.0
        %285 = vst.msk [vmem:[%s265 + $0x28] sm:$0xff] %vm271, 0.0
        %286 = vst.msk [vmem:[%s265 + $0x30] sm:$0xff] %vm271, 0.0
        %287 = vst.msk [vmem:[%s265 + $0x38] sm:$0xff] %vm271, 0.0
      $region40: #{tpu_custom_call.1} parent=35 // pred_fallthru
        _
      %v288 = vld [vmem:[%s254] sm:$0xff]
      %v290 = vcombine.high %v288, %v288
      %v292 = vpack.c.bf16 %v288, %v288
      %v293 = vpack.c.bf16 %v290, %v290
      %v294 = vld [vmem:[%s1] sm:$0xf]
      %v295 = vld [vmem:[%s1 + $0x4] sm:$0xf]
      %v296 = vld [vmem:[%s1 + $0x8] sm:$0xf]
      %v297 = vld [vmem:[%s1 + $0xc] sm:$0xf]
      %v298 = vld [vmem:[%s2] sm:$0xff]
      %v299 = vld [vmem:[%s2 + $0x8] sm:$0xff]
      %v300 = vld [vmem:[%s2 + $0x10] sm:$0xff]
      %v301 = vld [vmem:[%s2 + $0x18] sm:$0xff]
      %303 = vset.pattern.permute.xlu0 0
      %304 = vperm.xlu0 %303, %v298
      %v305 = vpop.permute.xlu0 %304
      %308 = vset.pattern.permute.xlu0 0
      %309 = vperm.xlu0 %308, %v299
      %v310 = vpop.permute.xlu0 %309
      %313 = vset.pattern.permute.xlu0 0
      %314 = vperm.xlu0 %313, %v300
      %v315 = vpop.permute.xlu0 %314
      %318 = vset.pattern.permute.xlu0 0
      %319 = vperm.xlu0 %318, %v301
      %v320 = vpop.permute.xlu0 %319
      %v326 = vunpack.c.l.b16 %v294
      %v327 = vunpack.c.l.b16 %v295
      %v328 = vunpack.c.l.b16 %v296
      %v329 = vunpack.c.l.b16 %v297
      %v330 = vpack.c.b16 %v327, %v326
      %v331 = vpack.c.b16 %v329, %v328
      %vm332 = vcmask 31744
      %v334 = vsel %vm332, %v330, 0
      %v337 = vsel %vm332, %v331, 0
      %vm339 = vcmask 1041408
      %v341 = vsel %vm339, %v292, 0
      %v344 = vsel %vm339, %v293, 0
      %346 = vmatprep.subr.bf16.mxu0 %v344
      %347 = vmatpush1.bf16.msra.mxu0 %v341
      %348 = vmatprep.subr.bf16.mxu0 0
      %349 = vmatpush1.bf16.msra.mxu0 0
      %350 = vmatprep.subr.bf16.mxu0 0
      %351 = vmatpush1.bf16.msra.mxu0 0
      %352 = vmatprep.subr.bf16.mxu0 0
      %353 = vmatpush1.bf16.msra.mxu0 0
      %354 = vmatprep.subr.bf16.mxu0 0
      %355 = vmatpush1.bf16.msra.mxu0 0
      %356 = vmatprep.subr.bf16.mxu0 0
      %357 = vmatpush1.bf16.msra.mxu0 0
      %358 = vmatprep.subr.bf16.mxu0 0
      %359 = vmatpush1.bf16.msra.mxu0 0
      %360 = vmatprep.subr.bf16.mxu0 0
      %361 = vmatpush1.bf16.msra.mxu0 0
      %362 = vmatprep.subr.bf16.mxu0 0
      %363 = vmatpush1.bf16.msra.mxu0 0
      %364 = vmatprep.subr.bf16.mxu0 0
      %365 = vmatpush1.bf16.msra.mxu0 0
      %366 = vmatprep.subr.bf16.mxu0 0
      %367 = vmatpush1.bf16.msra.mxu0 0
      %368 = vmatprep.subr.bf16.mxu0 0
      %369 = vmatpush1.bf16.msra.mxu0 0
      %370 = vmatprep.subr.bf16.mxu0 0
      %371 = vmatpush1.bf16.msra.mxu0 0
      %372 = vmatprep.subr.bf16.mxu0 0
      %373 = vmatpush1.bf16.msra.mxu0 0
      %374 = vmatprep.subr.bf16.mxu0 0
      %375 = vmatpush1.bf16.msra.mxu0 0
      %376 = vmatprep.subr.bf16.mxu0 0
      %377 = vmatpush1.bf16.msra.mxu0 0
      %378 = vmatprep.mubr.bf16.mxu0 0
      %379 = vmatmul.mubr.bf16.gmra.mrb[0].mxu0 %v334
      %v380 = vpop.f32.mrb[0].mxu0
      %v381 = vadd.f32 %v305, %v380
      %v382 = vpop.f32.mrb[0].mxu0
      %v383 = vadd.f32 %v305, %v382
      %v384 = vpop.f32.mrb[0].mxu0
      %v385 = vadd.f32 %v310, %v384
      %v386 = vpop.f32.mrb[0].mxu0
      %v387 = vadd.f32 %v310, %v386
      %388 = vmatprep.mubr.bf16.mxu0 0
      %389 = vmatmul.mubr.bf16.gmra.mrb[0].mxu0 %v337
      %v390 = vpop.f32.mrb[0].mxu0
      %v391 = vadd.f32 %v315, %v390
      %v392 = vpop.f32.mrb[0].mxu0
      %v393 = vadd.f32 %v315, %v392
      %v394 = vpop.f32.mrb[0].mxu0
      %v395 = vadd.f32 %v320, %v394
      %v396 = vpop.f32.mrb[0].mxu0
      %v397 = vadd.f32 %v320, %v396
      %398 = vdwg.mxu0
      %v399 = vmul.f32 %v381, 0.2
      %v400 = vmul.f32 %v383, 0.2
      %v401 = vmul.f32 %v385, 0.2
      %v402 = vmul.f32 %v387, 0.2
      %v403 = vmul.f32 %v391, 0.2
      %v404 = vmul.f32 %v393, 0.2
      %v405 = vmul.f32 %v395, 0.2
      %v406 = vmul.f32 %v397, 0.2
      %v407 = vmax.f32 %v381, %v399
      %v408 = vmax.f32 %v383, %v400
      %v409 = vmax.f32 %v385, %v401
      %v410 = vmax.f32 %v387, %v402
      %v411 = vmax.f32 %v391, %v403
      %v412 = vmax.f32 %v393, %v404
      %v413 = vmax.f32 %v395, %v405
      %v414 = vmax.f32 %v397, %v406
      %v415 = vld [vmem:[%s3] sm:$0xf]
      %v416 = vld [vmem:[%s3 + $0x4] sm:$0xf]
      %v417 = vld [vmem:[%s3 + $0x8] sm:$0xf]
      %v418 = vld [vmem:[%s3 + $0xc] sm:$0xf]
      %v419 = vld [vmem:[%s3 + $0x10] sm:$0xf]
      %v420 = vld [vmem:[%s3 + $0x14] sm:$0xf]
      %v421 = vld [vmem:[%s3 + $0x18] sm:$0xf]
      %v422 = vld [vmem:[%s3 + $0x1c] sm:$0xf]
      %v423 = vpack.c.bf16 %v409, %v407
      %v424 = vpack.c.bf16 %v410, %v408
      %v425 = vpack.c.bf16 %v413, %v411
      %v426 = vpack.c.bf16 %v414, %v412
      %v435 = vunpack.c.l.b16 %v415
      %v436 = vunpack.c.l.b16 %v416
      %v437 = vunpack.c.l.b16 %v417
      %v438 = vunpack.c.l.b16 %v418
      %v439 = vunpack.c.l.b16 %v419
      %v440 = vunpack.c.l.b16 %v420
      %v441 = vunpack.c.l.b16 %v421
      %v442 = vunpack.c.l.b16 %v422
      %v443 = vpack.c.b16 %v436, %v435
      %v444 = vpack.c.b16 %v438, %v437
      %v445 = vpack.c.b16 %v440, %v439
      %v446 = vpack.c.b16 %v442, %v441
      %vm447 = vcmask 261120
      %v449 = vsel %vm447, %v443, 0
      %v452 = vsel %vm447, %v444, 0
      %v455 = vsel %vm447, %v445, 0
      %v458 = vsel %vm447, %v446, 0
      %460 = vmatprep.subr.bf16.mxu0 %v424
      %461 = vmatpush1.bf16.msra.mxu0 %v423
      %462 = vmatprep.subr.bf16.mxu0 %v426
      %463 = vmatpush1.bf16.msra.mxu0 %v425
      %464 = vmatprep.subr.bf16.mxu0 0
      %465 = vmatpush1.bf16.msra.mxu0 0
      %466 = vmatprep.subr.bf16.mxu0 0
      %467 = vmatpush1.bf16.msra.mxu0 0
      %468 = vmatprep.subr.bf16.mxu0 0
      %469 = vmatpush1.bf16.msra.mxu0 0
      %470 = vmatprep.subr.bf16.mxu0 0
      %471 = vmatpush1.bf16.msra.mxu0 0
      %472 = vmatprep.subr.bf16.mxu0 0
      %473 = vmatpush1.bf16.msra.mxu0 0
      %474 = vmatprep.subr.bf16.mxu0 0
      %475 = vmatpush1.bf16.msra.mxu0 0
      %476 = vmatprep.subr.bf16.mxu0 0
      %477 = vmatpush1.bf16.msra.mxu0 0
      %478 = vmatprep.subr.bf16.mxu0 0
      %479 = vmatpush1.bf16.msra.mxu0 0
      %480 = vmatprep.subr.bf16.mxu0 0
      %481 = vmatpush1.bf16.msra.mxu0 0
      %482 = vmatprep.subr.bf16.mxu0 0
      %483 = vmatpush1.bf16.msra.mxu0 0
      %484 = vmatprep.subr.bf16.mxu0 0
      %485 = vmatpush1.bf16.msra.mxu0 0
      %486 = vmatprep.subr.bf16.mxu0 0
      %487 = vmatpush1.bf16.msra.mxu0 0
      %488 = vmatprep.subr.bf16.mxu0 0
      %489 = vmatpush1.bf16.msra.mxu0 0
      %490 = vmatprep.subr.bf16.mxu0 0
      %491 = vmatpush1.bf16.msra.mxu0 0
      %492 = vmatprep.mubr.bf16.mxu0 0
      %493 = vmatmul.mubr.bf16.gmra.mrb[0].mxu0 %v449
      %v494 = vpop.f32.mrb[0].mxu0
      %v495 = vadd.f32 0.0, %v494
      %v496 = vpop.f32.mrb[0].mxu0
      %v497 = vadd.f32 0.0, %v496
      %v498 = vpop.f32.mrb[0].mxu0
      %v499 = vadd.f32 0.0, %v498
      %v500 = vpop.f32.mrb[0].mxu0
      %v501 = vadd.f32 0.0, %v500
      %502 = vmatprep.mubr.bf16.mxu0 0
      %503 = vmatmul.mubr.bf16.gmra.mrb[0].mxu0 %v452
      %v504 = vpop.f32.mrb[0].mxu0
      %v505 = vadd.f32 0.0, %v504
      %v506 = vpop.f32.mrb[0].mxu0
      %v507 = vadd.f32 0.0, %v506
      %v508 = vpop.f32.mrb[0].mxu0
      %v509 = vadd.f32 0.0, %v508
      %v510 = vpop.f32.mrb[0].mxu0
      %v511 = vadd.f32 0.0, %v510
      %512 = vmatprep.mubr.bf16.mxu0 0
      %513 = vmatmul.mubr.bf16.gmra.mrb[0].mxu0 %v455
      %v514 = vpop.f32.mrb[0].mxu0
      %v515 = vadd.f32 0.0, %v514
      %v516 = vpop.f32.mrb[0].mxu0
      %v517 = vadd.f32 0.0, %v516
      %v518 = vpop.f32.mrb[0].mxu0
      %v519 = vadd.f32 0.0, %v518
      %v520 = vpop.f32.mrb[0].mxu0
      %v521 = vadd.f32 0.0, %v520
      %522 = vmatprep.mubr.bf16.mxu0 0
      %523 = vmatmul.mubr.bf16.gmra.mrb[0].mxu0 %v458
      %v524 = vpop.f32.mrb[0].mxu0
      %v525 = vadd.f32 0.0, %v524
      %v526 = vpop.f32.mrb[0].mxu0
      %v527 = vadd.f32 0.0, %v526
      %v528 = vpop.f32.mrb[0].mxu0
      %v529 = vadd.f32 0.0, %v528
      %v530 = vpop.f32.mrb[0].mxu0
      %v531 = vadd.f32 0.0, %v530
      %532 = vdwg.mxu0
      %v533 = vld [vmem:[%s260] sm:$0xff]
      %v534 = vld [vmem:[%s260 + $0x8] sm:$0xff]
      %v535 = vld [vmem:[%s260 + $0x10] sm:$0xff]
      %v536 = vld [vmem:[%s260 + $0x18] sm:$0xff]
      %v537 = vld [vmem:[%s260 + $0x20] sm:$0xff]
      %v538 = vld [vmem:[%s260 + $0x28] sm:$0xff]
      %v539 = vld [vmem:[%s260 + $0x30] sm:$0xff]
      %v540 = vld [vmem:[%s260 + $0x38] sm:$0xff]
      %v541 = vadd.f32 %v495, %v497
      %542 = vadd.xlane.f32.xlu0 %v541
      %v543 = vpop.xlane.xlu0 %542
      %v544 = vadd.f32 %v499, %v501
      %545 = vadd.xlane.f32.xlu0 %v544
      %v546 = vpop.xlane.xlu0 %545
      %v547 = vadd.f32 %v505, %v507
      %548 = vadd.xlane.f32.xlu0 %v547
      %v549 = vpop.xlane.xlu0 %548
      %v550 = vadd.f32 %v509, %v511
      %551 = vadd.xlane.f32.xlu0 %v550
      %v552 = vpop.xlane.xlu0 %551
      %v553 = vadd.f32 %v515, %v517
      %554 = vadd.xlane.f32.xlu0 %v553
      %v555 = vpop.xlane.xlu0 %554
      %v556 = vadd.f32 %v519, %v521
      %557 = vadd.xlane.f32.xlu0 %v556
      %v558 = vpop.xlane.xlu0 %557
      %v559 = vadd.f32 %v525, %v527
      %560 = vadd.xlane.f32.xlu0 %v559
      %v561 = vpop.xlane.xlu0 %560
      %v562 = vadd.f32 %v529, %v531
      %563 = vadd.xlane.f32.xlu0 %v562
      %v564 = vpop.xlane.xlu0 %563
      %v565 = vadd.f32 %v533, %v543
      %v566 = vadd.f32 %v534, %v546
      %v567 = vadd.f32 %v535, %v549
      %v568 = vadd.f32 %v536, %v552
      %v569 = vadd.f32 %v537, %v555
      %v570 = vadd.f32 %v538, %v558
      %v571 = vadd.f32 %v539, %v561
      %v572 = vadd.f32 %v540, %v564
      %vm573 = vcmask 7168
      %574 = vst.msk [vmem:[%s260] sm:$0xff] %vm573, %v565
      %575 = vst.msk [vmem:[%s260 + $0x8] sm:$0xff] %vm573, %v566
      %576 = vst.msk [vmem:[%s260 + $0x10] sm:$0xff] %vm573, %v567
      %577 = vst.msk [vmem:[%s260 + $0x18] sm:$0xff] %vm573, %v568
      %578 = vst.msk [vmem:[%s260 + $0x20] sm:$0xff] %vm573, %v569
      %579 = vst.msk [vmem:[%s260 + $0x28] sm:$0xff] %vm573, %v570
      %580 = vst.msk [vmem:[%s260 + $0x30] sm:$0xff] %vm573, %v571
      %581 = vst.msk [vmem:[%s260 + $0x38] sm:$0xff] %vm573, %v572
      %v582 = vld [vmem:[%s265] sm:$0xff]
      %v583 = vld [vmem:[%s265 + $0x8] sm:$0xff]
      %v584 = vld [vmem:[%s265 + $0x10] sm:$0xff]
      %v585 = vld [vmem:[%s265 + $0x18] sm:$0xff]
      %v586 = vld [vmem:[%s265 + $0x20] sm:$0xff]
      %v587 = vld [vmem:[%s265 + $0x28] sm:$0xff]
      %v588 = vld [vmem:[%s265 + $0x30] sm:$0xff]
      %v589 = vld [vmem:[%s265 + $0x38] sm:$0xff]
      %v590 = vmul.f32 %v495, %v495
      %v591 = vmul.f32 %v497, %v497
      %v592 = vmul.f32 %v499, %v499
      %v593 = vmul.f32 %v501, %v501
      %v594 = vmul.f32 %v505, %v505
      %v595 = vmul.f32 %v507, %v507
      %v596 = vmul.f32 %v509, %v509
      %v597 = vmul.f32 %v511, %v511
      %v598 = vmul.f32 %v515, %v515
      %v599 = vmul.f32 %v517, %v517
      %v600 = vmul.f32 %v519, %v519
      %v601 = vmul.f32 %v521, %v521
      %v602 = vmul.f32 %v525, %v525
      %v603 = vmul.f32 %v527, %v527
      %v604 = vmul.f32 %v529, %v529
      %v605 = vmul.f32 %v531, %v531
      %v606 = vadd.f32 %v590, %v591
      %607 = vadd.xlane.f32.xlu0 %v606
      %v608 = vpop.xlane.xlu0 %607
      %v609 = vadd.f32 %v592, %v593
      %610 = vadd.xlane.f32.xlu0 %v609
      %v611 = vpop.xlane.xlu0 %610
      %v612 = vadd.f32 %v594, %v595
      %613 = vadd.xlane.f32.xlu0 %v612
      %v614 = vpop.xlane.xlu0 %613
      %v615 = vadd.f32 %v596, %v597
      %616 = vadd.xlane.f32.xlu0 %v615
      %v617 = vpop.xlane.xlu0 %616
      %v618 = vadd.f32 %v598, %v599
      %619 = vadd.xlane.f32.xlu0 %v618
      %v620 = vpop.xlane.xlu0 %619
      %v621 = vadd.f32 %v600, %v601
      %622 = vadd.xlane.f32.xlu0 %v621
      %v623 = vpop.xlane.xlu0 %622
      %v624 = vadd.f32 %v602, %v603
      %625 = vadd.xlane.f32.xlu0 %v624
      %v626 = vpop.xlane.xlu0 %625
      %v627 = vadd.f32 %v604, %v605
      %628 = vadd.xlane.f32.xlu0 %v627
      %v629 = vpop.xlane.xlu0 %628
      %v630 = vadd.f32 %v582, %v608
      %v631 = vadd.f32 %v583, %v611
      %v632 = vadd.f32 %v584, %v614
      %v633 = vadd.f32 %v585, %v617
      %v634 = vadd.f32 %v586, %v620
      %v635 = vadd.f32 %v587, %v623
      %v636 = vadd.f32 %v588, %v626
      %v637 = vadd.f32 %v589, %v629
      %638 = vst.msk [vmem:[%s265] sm:$0xff] %vm573, %v630
      %639 = vst.msk [vmem:[%s265 + $0x8] sm:$0xff] %vm573, %v631
      %640 = vst.msk [vmem:[%s265 + $0x10] sm:$0xff] %vm573, %v632
      %641 = vst.msk [vmem:[%s265 + $0x18] sm:$0xff] %vm573, %v633
      %642 = vst.msk [vmem:[%s265 + $0x20] sm:$0xff] %vm573, %v634
      %643 = vst.msk [vmem:[%s265 + $0x28] sm:$0xff] %vm573, %v635
      %644 = vst.msk [vmem:[%s265 + $0x30] sm:$0xff] %vm573, %v636
      %645 = vst.msk [vmem:[%s265 + $0x38] sm:$0xff] %vm573, %v637
      %p646 = scmp.lt.s32.totalorder %s21, 1
      %s647 = scalar_select %p646, %s21, 1
      %s648 = smul.addr %s647, 8
      %s649 = smul.addr %s648, 8
      %s650 = scalar_lea.vmem %s4, %s649
      %p651 = scmp.lt.s32.totalorder %s21, 1
      %s652 = scalar_select %p651, %s21, 1
      %s653 = smul.addr %s652, 8
      %s654 = smul.addr %s653, 8
      %s655 = scalar_lea.vmem %s5, %s654
      // Predicated region
      $region41: #{tpu_custom_call.1} parent=35 // pred_check
        %p656 = pneg %p138
      $region42: #{tpu_custom_call.1} parent=35 // pred_check_branch
        %658 = sbr.rel (%p656) target = $region44
      $region43: #{tpu_custom_call.1} parent=35 // pred_region
        _
      $region44: #{tpu_custom_call.1} parent=35 // pred_fallthru
        _
      // Predicated region
      $region45: #{tpu_custom_call.1} parent=35 // pred_check
        %p659 = pneg %p164
      $region46: #{tpu_custom_call.1} parent=35 // pred_check_branch
        %661 = sbr.rel (%p659) target = $region48
      $region47: #{tpu_custom_call.1} parent=35 // pred_region
        _
      $region48: #{tpu_custom_call.1} parent=35 // pred_fallthru
        _
    $region36: #{tpu_custom_call.1} parent=5 // pred_fallthru
      _
    %p662 = scmp.le.s32.totalorder 2, %s12
    // Predicated region
    $region49: #{tpu_custom_call.1} parent=5 // pred_check
      %p663 = pneg %p662
    $region50: #{tpu_custom_call.1} parent=5 // pred_check_branch
      %665 = sbr.rel (%p663) target = $region52
    $region51: #{tpu_custom_call.1} parent=5 // pred_region
      %s666 = ssub.s32 %s12, 2
      // Predicated region
      $region53: #{tpu_custom_call.1} parent=51 // pred_check
        %p667 = pneg %p144
      $region54: #{tpu_custom_call.1} parent=51 // pred_check_branch
        %669 = sbr.rel (%p667) target = $region56
      $region55: #{tpu_custom_call.1} parent=51 // pred_region
        %p670 = scmp.lt.s32.totalorder %s23, 1
        %s671 = scalar_select %p670, %s23, 1
        %s672 = smul.addr %s671, 8
        %s673 = smul.addr %s672, 8
        %s674 = scalar_lea.vmem %s4, %s673
      $region56: #{tpu_custom_call.1} parent=51 // pred_fallthru
        _
      // Predicated region
      $region57: #{tpu_custom_call.1} parent=51 // pred_check
        %p675 = pneg %p170
      $region58: #{tpu_custom_call.1} parent=51 // pred_check_branch
        %677 = sbr.rel (%p675) target = $region60
      $region59: #{tpu_custom_call.1} parent=51 // pred_region
        %p678 = scmp.lt.s32.totalorder %s23, 1
        %s679 = scalar_select %p678, %s23, 1
        %s680 = smul.addr %s679, 8
        %s681 = smul.addr %s680, 8
        %s682 = scalar_lea.vmem %s5, %s681
      $region60: #{tpu_custom_call.1} parent=51 // pred_fallthru
        _
    $region52: #{tpu_custom_call.1} parent=5 // pred_fallthru
      _
  $region6: #{tpu_custom_call.1} parent=0 // loop_footer
    %s16 = sadd.s32 1, %s12
  $region7: #{tpu_custom_call.1} parent=0 // loop_footer_branch
    %11 = sbr.rel target = $region3
  $region8: #{tpu_custom_call.1} parent=0 // loop_exit
    _

</llo_original>
